<compile_context>
chip_gen: v6e
topology: v6e:2x2x1
jax: 0.10.0
libtpu: 0.0.40
codegen_flags: <defaults>
</compile_context>

<pallas_src>
import jax
import jax.numpy as jnp
from jax.experimental import pallas as pl
from jax.experimental.pallas import tpu as pltpu

LANE = 128
SUBLANE = 8
BN_EPS = 1e-5
MAX_TILE_B = 512


def _round_up(n, m):
    return ((n + m - 1) // m) * m


def _pick_batch_tiling(batch):
    """Row tiles as large as 512 (multiple of 8); >=2 grid steps when possible
    so the megacore 'parallel' axis has something to shard."""
    b8 = _round_up(batch, SUBLANE)
    if b8 < 2 * SUBLANE:
        return b8, b8                       # too small to split across cores
    tile_b = min(MAX_TILE_B, _round_up((b8 + 1) // 2, SUBLANE))
    batch_pad = _round_up(b8, tile_b)
    return tile_b, batch_pad


def _const_spec(shape):
    """Full-extent, grid-invariant block; single-buffered when supported."""
    try:
        return pl.BlockSpec(shape, lambda i: (0, 0), pipeline_mode=pl.Buffered(1))
    except Exception:  # older jax without pipeline_mode / Buffered
        return pl.BlockSpec(shape, lambda i: (0, 0))


# ---------------------------------------------------------------------------
# Fused Pallas kernel: (Linear -> ReLU) x (L-1) -> Linear
# (eval-mode BatchNorm folded into the weights; dropout is identity at eval.)
# ---------------------------------------------------------------------------
def _make_fused_mlp_kernel(num_linear):
    def kernel(*refs):
        x_ref = refs[0]
        o_ref = refs[-1]
        h = x_ref[...]                               # [TILE_B, K] f32
        for l in range(num_linear):                  # static unrolled loop
            w = refs[1 + 2 * l][...]                 # [K, N_pad]  bf16
            b = refs[2 + 2 * l][...]                 # [1, N_pad]  f32
            h = jnp.dot(h.astype(jnp.bfloat16), w,
                        preferred_element_type=jnp.float32) + b
            if l < num_linear - 1:                   # hidden layers get ReLU
                h = jnp.maximum(h, 0.0)
        o_ref[...] = h.astype(o_ref.dtype)
    return kernel


# ---------------------------------------------------------------------------
# Wrapper: batch-tiled "parallel" grid; weights fully VMEM-resident (bf16,
# single-buffered); x never feature-padded in HBM.
# ---------------------------------------------------------------------------
def fused_mlp(x, folded_layers, output_size):
    """x: [batch, in_f] f32. folded_layers: list of (w bf16 [K, N_pad], b f32 [1, N_pad])."""
    batch, in_f = x.shape
    out_pad = folded_layers[-1][0].shape[1]
    num_linear = len(folded_layers)

    tile_b, batch_pad = _pick_batch_tiling(batch)
    if batch_pad != batch:
        x = jnp.pad(x, ((0, batch_pad - batch), (0, 0)))   # batch-only pad

    kernel = _make_fused_mlp_kernel(num_linear)

    in_specs = [pl.BlockSpec((tile_b, in_f), lambda i: (i, 0))]
    args = [x]
    for w, b in folded_layers:
        in_specs.append(_const_spec(w.shape))
        in_specs.append(_const_spec(b.shape))
        args.append(w)
        args.append(b)

    # ---- cost estimate & explicit VMEM budget ------------------------------
    flops = 2 * batch_pad * sum(w.shape[0] * w.shape[1] for w, _ in folded_layers)
    weight_bytes = sum(w.size * w.dtype.itemsize + b.size * b.dtype.itemsize
                       for w, b in folded_layers)
    bytes_accessed = int(4 * x.size + weight_bytes + 4 * batch_pad * out_pad)

    max_n = max(w.shape[1] for w, _ in folded_layers)
    vmem_need = (weight_bytes                              # single-buffered consts
                 + 2 * tile_b * (in_f + out_pad) * 4       # double-buffered io tiles
                 + 4 * tile_b * max_n * 4)                 # live intermediates (slack)
    vmem_limit = int(min(max(2 * vmem_need, 32 << 20), 64 << 20))

    out = pl.pallas_call(
        kernel,
        out_shape=jax.ShapeDtypeStruct((batch_pad, out_pad), jnp.float32),
        grid=(batch_pad // tile_b,),
        in_specs=in_specs,
        out_specs=pl.BlockSpec((tile_b, out_pad), lambda i: (i, 0)),
        compiler_params=pltpu.CompilerParams(
            dimension_semantics=("parallel",),
            vmem_limit_bytes=vmem_limit,
        ),
        cost_estimate=pl.CostEstimate(
            flops=flops, transcendentals=0, bytes_accessed=bytes_accessed
        ),
    )(*args)
    # TODO(synk): if the consumer accepts 128-padded logits, skip this slice.
    return out[:batch, :output_size]


# ---------------------------------------------------------------------------
# Parameter construction (deterministic, synthetic; Linear stored as [in, out]
# so the kernel does x @ W + b).
# ---------------------------------------------------------------------------
def init_params(key, input_size, output_size, hidden_units):
    hidden = []
    prev = input_size
    for h in hidden_units:
        key, kw, kb, kg, kbeta, km, kv = jax.random.split(key, 7)
        w = jax.random.normal(kw, (prev, h), jnp.float32) / jnp.sqrt(prev)
        b = 0.01 * jax.random.normal(kb, (h,), jnp.float32)
        gamma = 1.0 + 0.1 * jax.random.normal(kg, (h,), jnp.float32)
        beta = 0.1 * jax.random.normal(kbeta, (h,), jnp.float32)
        mean = 0.1 * jax.random.normal(km, (h,), jnp.float32)
        var = 1.0 + 0.1 * jax.random.uniform(kv, (h,), jnp.float32)
        hidden.append(dict(w=w, b=b, gamma=gamma, beta=beta, mean=mean, var=var))
        prev = h
    key, kw, kb = jax.random.split(key, 3)
    w_out = jax.random.normal(kw, (prev, output_size), jnp.float32) / jnp.sqrt(prev)
    b_out = 0.01 * jax.random.normal(kb, (output_size,), jnp.float32)
    return hidden, dict(w=w_out, b=b_out)


def fold_and_pad(hidden_params, out_params):
    """Fold each hidden layer's eval-mode BN into the NEXT Linear (exact after
    ReLU, done in f32), pad only output feature dims (N) to the 128-lane width,
    and cast weights to bf16 (biases stay f32).  The first layer's K dim
    (input_size) stays unpadded so x never needs feature padding in HBM."""
    linears = []
    scale_prev = None
    shift_prev = None
    for p in hidden_params:
        w, b = p["w"], p["b"]
        if scale_prev is not None:
            b = shift_prev @ w + b
            w = scale_prev[:, None] * w
        linears.append((w, b))
        scale = p["gamma"] / jnp.sqrt(p["var"] + BN_EPS)
        shift = p["beta"] - p["mean"] * scale
        scale_prev, shift_prev = scale, shift

    w, b = out_params["w"], out_params["b"]
    b = shift_prev @ w + b
    w = scale_prev[:, None] * w
    linears.append((w, b))

    padded = []
    k_pad_prev = linears[0][0].shape[0]       # first K stays = input_size
    for w, b in linears:
        k, n = w.shape
        k_pad = k_pad_prev                    # = previous layer's padded N
        n_pad = _round_up(n, LANE)
        w_pad = jnp.zeros((k_pad, n_pad), jnp.float32).at[:k, :n].set(w)
        b_pad = jnp.zeros((1, n_pad), jnp.float32).at[0, :n].set(b)
        padded.append((w_pad.astype(jnp.bfloat16), b_pad))
        k_pad_prev = n_pad
    return padded


# ---------------------------------------------------------------------------
# Main
# ---------------------------------------------------------------------------
if __name__ == "__main__":
    input_size = 32
    hidden_units = (64, 32)
    output_size = 16
    batch = 32            # -> 2 grid steps of 16 rows (exercises the parallel axis)

    key = jax.random.PRNGKey(0)
    kx, kp = jax.random.split(key)
    x = jax.random.normal(kx, (batch, input_size), jnp.float32)

    hidden_params, out_params = init_params(kp, input_size, output_size, hidden_units)
    folded = fold_and_pad(hidden_params, out_params)

    fwd = jax.jit(lambda x, folded: fused_mlp(x, folded, output_size))
    y = fwd(x, folded)
    jax.block_until_ready(y)
    assert y.shape == (batch, output_size)

    # 1) Tight check vs a JAX reference mirroring the kernel's bf16-matmul /
    #    f32-accumulate numerics (validates the Pallas tiling/DMA plumbing).
    def ref_bf16(x, folded):
        h = x
        for l, (w, b) in enumerate(folded):
            h = jnp.dot(h.astype(jnp.bfloat16), w,
                        preferred_element_type=jnp.float32) + b
            if l < len(folded) - 1:
                h = jnp.maximum(h, 0.0)
        return h[:, :output_size]

    y_bf16 = ref_bf16(x, folded)
    assert jnp.allclose(y, y_bf16, atol=1e-3, rtol=1e-3), \
        float(jnp.abs(y - y_bf16).max())

    # 2) Loose check vs original f32 eval-mode PyTorch semantics:
    #    (Linear -> ReLU -> BN(running stats) -> Dropout(identity))*, Linear.
    #    Tolerance loosened because the kernel runs matmuls in bf16.
    def ref_f32(x, hps, op):
        h = x
        for p in hps:
            h = jnp.maximum(h @ p["w"] + p["b"], 0.0)
            scale = p["gamma"] / jnp.sqrt(p["var"] + BN_EPS)
            shift = p["beta"] - p["mean"] * scale
            h = h * scale + shift
        return h @ op["w"] + op["b"]

    y_f32 = ref_f32(x, hidden_params, out_params)
    assert jnp.allclose(y, y_f32, atol=5e-2, rtol=5e-2), \
        float(jnp.abs(y - y_f32).max())

    print("KERNEL_OK")
</pallas_src>

<mosaic_0001>
module attributes {stable_mosaic.version = 11 : i64} {
  func.func @kernel(%arg0: i32, %arg1: memref<16x32xf32, #tpu.memory_space<vmem>>, %arg2: memref<32x128xbf16, #tpu.memory_space<vmem>>, %arg3: memref<1x128xf32, #tpu.memory_space<vmem>>, %arg4: memref<128x128xbf16, #tpu.memory_space<vmem>>, %arg5: memref<1x128xf32, #tpu.memory_space<vmem>>, %arg6: memref<128x128xbf16, #tpu.memory_space<vmem>>, %arg7: memref<1x128xf32, #tpu.memory_space<vmem>>, %arg8: memref<16x128xf32, #tpu.memory_space<vmem>>) attributes {dimension_semantics = [#tpu.dimension_semantics<parallel>], iteration_bounds = array<i64: 2>, scalar_prefetch = 0 : i64, scratch_operands = 0 : i64, tpu.core_type = #tpu.core_type<tc>, window_params = [{transform_indices = @transform_0, window_bounds = array<i64: 16, 32>}, {pipeline_mode = #tpu.pipeline_mode<synchronous>, transform_indices = @transform_1, window_bounds = array<i64: 32, 128>}, {pipeline_mode = #tpu.pipeline_mode<synchronous>, transform_indices = @transform_2, window_bounds = array<i64: 1, 128>}, {pipeline_mode = #tpu.pipeline_mode<synchronous>, transform_indices = @transform_3, window_bounds = array<i64: 128, 128>}, {pipeline_mode = #tpu.pipeline_mode<synchronous>, transform_indices = @transform_4, window_bounds = array<i64: 1, 128>}, {pipeline_mode = #tpu.pipeline_mode<synchronous>, transform_indices = @transform_5, window_bounds = array<i64: 128, 128>}, {pipeline_mode = #tpu.pipeline_mode<synchronous>, transform_indices = @transform_6, window_bounds = array<i64: 1, 128>}, {transform_indices = @transform_7, window_bounds = array<i64: 16, 128>}]} {
    %c0 = arith.constant 0 : index
    %c0_0 = arith.constant 0 : index
    %0 = vector.load %arg1[%c0, %c0_0] : memref<16x32xf32, #tpu.memory_space<vmem>>, vector<16x32xf32>
    %c0_1 = arith.constant 0 : index
    %c0_2 = arith.constant 0 : index
    %1 = vector.load %arg2[%c0_1, %c0_2] : memref<32x128xbf16, #tpu.memory_space<vmem>>, vector<32x128xbf16>
    %c0_3 = arith.constant 0 : index
    %c0_4 = arith.constant 0 : index
    %2 = vector.load %arg3[%c0_3, %c0_4] : memref<1x128xf32, #tpu.memory_space<vmem>>, vector<1x128xf32>
    %3 = arith.truncf %0 : vector<16x32xf32> to vector<16x32xbf16>
    %cst = arith.constant dense<0.000000e+00> : vector<16x128xf32>
    %4 = tpu.matmul %3, %1, %cst {dimension_numbers = #tpu.dot_dimension_numbers<[1], [0], [0], [1], [0, 0, 1, 1], [], []>} : vector<16x32xbf16>, vector<32x128xbf16>, vector<16x128xf32> -> vector<16x128xf32>
    %5 = vector.broadcast %2 : vector<1x128xf32> to vector<16x128xf32>
    %6 = arith.addf %4, %5 : vector<16x128xf32>
    %cst_5 = arith.constant 0.000000e+00 : f32
    %7 = vector.broadcast %cst_5 : f32 to vector<16x128xf32>
    %8 = arith.maximumf %6, %7 : vector<16x128xf32>
    %c0_6 = arith.constant 0 : index
    %c0_7 = arith.constant 0 : index
    %9 = vector.load %arg4[%c0_6, %c0_7] : memref<128x128xbf16, #tpu.memory_space<vmem>>, vector<128x128xbf16>
    %c0_8 = arith.constant 0 : index
    %c0_9 = arith.constant 0 : index
    %10 = vector.load %arg5[%c0_8, %c0_9] : memref<1x128xf32, #tpu.memory_space<vmem>>, vector<1x128xf32>
    %11 = arith.truncf %8 : vector<16x128xf32> to vector<16x128xbf16>
    %cst_10 = arith.constant dense<0.000000e+00> : vector<16x128xf32>
    %12 = tpu.matmul %11, %9, %cst_10 {dimension_numbers = #tpu.dot_dimension_numbers<[1], [0], [0], [1], [0, 0, 1, 1], [], []>} : vector<16x128xbf16>, vector<128x128xbf16>, vector<16x128xf32> -> vector<16x128xf32>
    %13 = vector.broadcast %10 : vector<1x128xf32> to vector<16x128xf32>
    %14 = arith.addf %12, %13 : vector<16x128xf32>
    %cst_11 = arith.constant 0.000000e+00 : f32
    %15 = vector.broadcast %cst_11 : f32 to vector<16x128xf32>
    %16 = arith.maximumf %14, %15 : vector<16x128xf32>
    %c0_12 = arith.constant 0 : index
    %c0_13 = arith.constant 0 : index
    %17 = vector.load %arg6[%c0_12, %c0_13] : memref<128x128xbf16, #tpu.memory_space<vmem>>, vector<128x128xbf16>
    %c0_14 = arith.constant 0 : index
    %c0_15 = arith.constant 0 : index
    %18 = vector.load %arg7[%c0_14, %c0_15] : memref<1x128xf32, #tpu.memory_space<vmem>>, vector<1x128xf32>
    %19 = arith.truncf %16 : vector<16x128xf32> to vector<16x128xbf16>
    %cst_16 = arith.constant dense<0.000000e+00> : vector<16x128xf32>
    %20 = tpu.matmul %19, %17, %cst_16 {dimension_numbers = #tpu.dot_dimension_numbers<[1], [0], [0], [1], [0, 0, 1, 1], [], []>} : vector<16x128xbf16>, vector<128x128xbf16>, vector<16x128xf32> -> vector<16x128xf32>
    %21 = vector.broadcast %18 : vector<1x128xf32> to vector<16x128xf32>
    %22 = arith.addf %20, %21 : vector<16x128xf32>
    %c0_17 = arith.constant 0 : index
    %c0_18 = arith.constant 0 : index
    %23 = vector.load %arg8[%c0_17, %c0_18] : memref<16x128xf32, #tpu.memory_space<vmem>>, vector<16x128xf32>
    tpu.vector_store %arg8[%c0_17, %c0_18], %22 {strides = array<i32>} : memref<16x128xf32, #tpu.memory_space<vmem>>, vector<16x128xf32>,
    return
  }
  func.func @transform_0(%arg0: i32) -> (i32, i32) {
    %c0_i32 = arith.constant 0 : i32
    %c0_i32_0 = arith.constant 0 : i32
    return %arg0, %c0_i32 : i32, i32
  }
  func.func @transform_1(%arg0: i32) -> (i32, i32) {
    %c0_i32 = arith.constant 0 : i32
    %c0_i32_0 = arith.constant 0 : i32
    %c0_i32_1 = arith.constant 0 : i32
    return %c0_i32, %c0_i32_0 : i32, i32
  }
  func.func @transform_2(%arg0: i32) -> (i32, i32) {
    %c0_i32 = arith.constant 0 : i32
    %c0_i32_0 = arith.constant 0 : i32
    %c0_i32_1 = arith.constant 0 : i32
    return %c0_i32, %c0_i32_0 : i32, i32
  }
  func.func @transform_3(%arg0: i32) -> (i32, i32) {
    %c0_i32 = arith.constant 0 : i32
    %c0_i32_0 = arith.constant 0 : i32
    %c0_i32_1 = arith.constant 0 : i32
    return %c0_i32, %c0_i32_0 : i32, i32
  }
  func.func @transform_4(%arg0: i32) -> (i32, i32) {
    %c0_i32 = arith.constant 0 : i32
    %c0_i32_0 = arith.constant 0 : i32
    %c0_i32_1 = arith.constant 0 : i32
    return %c0_i32, %c0_i32_0 : i32, i32
  }
  func.func @transform_5(%arg0: i32) -> (i32, i32) {
    %c0_i32 = arith.constant 0 : i32
    %c0_i32_0 = arith.constant 0 : i32
    %c0_i32_1 = arith.constant 0 : i32
    return %c0_i32, %c0_i32_0 : i32, i32
  }
  func.func @transform_6(%arg0: i32) -> (i32, i32) {
    %c0_i32 = arith.constant 0 : i32
    %c0_i32_0 = arith.constant 0 : i32
    %c0_i32_1 = arith.constant 0 : i32
    return %c0_i32, %c0_i32_0 : i32, i32
  }
  func.func @transform_7(%arg0: i32) -> (i32, i32) {
    %c0_i32 = arith.constant 0 : i32
    %c0_i32_0 = arith.constant 0 : i32
    return %arg0, %c0_i32 : i32, i32
  }
}

</mosaic_0001>

<llo_original>
// kernel: _lambda_.1
$region0: #{_lambda_.1}
  #allocation0 [shape = 'u32[]', space=smem, size = 0x4, offset = 0x4, fixed_abs, tag = 'smem constant byte address 0x4 - core index']
  #allocation1 [shape = 'u32[144,128]{1,0:T(1,128)}', space=vmem, size = 0x12000, scoped, tag = 'internal scratch']
  %s0 = inlined_call_operand.hbm [shape: f32[32,32], index: 0, kind: input, shape index: {}]
  %s1 = inlined_call_operand.hbm [shape: bf16[32,128], index: 1, kind: input, shape index: {}]
  %s2 = inlined_call_operand.vmem [shape: f32[1,128], index: 2, kind: input, shape index: {}]
  %s3 = inlined_call_operand.hbm [shape: bf16[128,128], index: 3, kind: input, shape index: {}]
  %s4 = inlined_call_operand.vmem [shape: f32[1,128], index: 4, kind: input, shape index: {}]
  %s5 = inlined_call_operand.hbm [shape: bf16[128,128], index: 5, kind: input, shape index: {}]
  %s6 = inlined_call_operand.vmem [shape: f32[1,128], index: 6, kind: input, shape index: {}]
  %s7 = inlined_call_operand.vmem [shape: f32[32,128], index: 7, kind: output, shape index: {}]
  %s8 = sld [smem:[#allocation0]]
  $region77: #{_lambda_.1} parent=0
    _
  %s10 = ssub.s32 1, %s8
  %s11 = scalar_select 0, %s10, %s8
  $region1: #{_lambda_.1} parent=0
    #allocation2 [shape = 'u8[16384]{0}', space=vmem, size = 0x4000, scoped, tag = 'input window, operand 0']
    #allocation3 [shape = 's32[2]{0}', space=sflag, size = 0x8, scoped, tag = 'scoped memory for _lambda_.1']
    #allocation4 [shape = 'u8[8192]{0}', space=vmem, size = 0x2000, scoped, tag = 'input window, operand 1, single buffered']
    #allocation5 [shape = 's32[1]{0}', space=sflag, size = 0x4, scoped, tag = 'scoped memory for _lambda_.1']
    #allocation6 [shape = 'u8[32768]{0}', space=vmem, size = 0x8000, scoped, tag = 'input window, operand 3, single buffered']
    #allocation7 [shape = 'u8[32768]{0}', space=vmem, size = 0x8000, scoped, tag = 'input window, operand 5, single buffered']
    #allocation8 [shape = 's32[1]{0}', space=sflag, size = 0x4, scoped, tag = 'scoped memory for _lambda_.1']
    %12 = vsyncpa [#allocation3], 0
    %s13 = scalar_lea.sflag [#allocation3], 1
    %14 = vsyncpa %s13, 0
    %15 = vsyncpa [#allocation5], 0
    %16 = vsyncpa [#allocation8], 0
    loop: start=0, step=1, limit=4
    $region2: #{_lambda_.1} parent=1 // loop_pre_header
      _
    $region3: #{_lambda_.1} parent=1 // loop_header
      %s18 = sphi 0, %s22
      %p19 = scmp.ge.s32.totalorder %s18, 4
      %s28 = sphi 0, %s30
      %s31 = sphi 0, %s28
      %s32 = sphi 0, %s31
      %s48 = sphi 0, %s32
      %s52 = sphi 0, %s52
      %s54 = sphi 0, %s52
      %s55 = sphi 0, %s54
      %s69 = sphi 0, %s55
      %s73 = sphi 0, %s73
      %s75 = sphi 0, %s73
      %s76 = sphi 0, %s75
      %s90 = sphi 0, %s76
      %s94 = sphi 0, %s94
      %s96 = sphi 0, %s94
      %s97 = sphi 0, %s96
      %s111 = sphi 0, %s97
      %s115 = sphi 0, %s115
      %s117 = sphi 0, %s115
      %s118 = sphi 0, %s117
      %s132 = sphi 0, %s118
      %s136 = sphi 0, %s136
      %s138 = sphi 0, %s136
      %s139 = sphi 0, %s138
      %s153 = sphi 0, %s139
      %s157 = sphi 0, %s157
      %s159 = sphi 0, %s157
      %s160 = sphi 0, %s159
      %s174 = sphi 0, %s160
      %s180 = sphi 0, %s182
      %s183 = sphi 0, %s180
      %s184 = sphi 0, %s183
      %s200 = sphi 0, %s184
    $region4: #{_lambda_.1} parent=1 // loop_header_branch
      %21 = sbr.rel (%p19) target = $region8
    $region5: #{_lambda_.1} parent=1 // loop_body
      %s23 = ssub.s32 %s18, 1
      %s24 = ssub.s32 %s18, 2
      %s25 = sadd.s32 %s18, 1
      %s26 = ssub.s32 %s18, %s25
      %p27 = scmp.eq.s32.totalorder %s26, 0
      %s29 = sadd.s32 %s28, 1
      %s30 = scalar_select %p27, %s28, %s29
      %p33 = pneg %p27
      %p34 = scmp.eq.s32.totalorder %s18, 1
      %p35 = por %p33, %p34
      %p36 = scmp.ne.s32.totalorder %s28, %s31
      %p37 = scmp.eq.s32.totalorder %s18, 0
      %p38 = por %p36, %p37
      %p39 = scmp.ne.s32.totalorder %s28, %s31
      %p40 = scmp.eq.s32.totalorder %s23, 1
      %p41 = por %p39, %p40
      %p42 = scmp.ne.s32.totalorder %s31, %s32
      %p43 = scmp.eq.s32.totalorder %s23, 0
      %p44 = por %p42, %p43
      %p45 = scmp.ne.s32.totalorder %s31, %s32
      %p46 = scmp.eq.s32.totalorder %s24, 1
      %p47 = por %p45, %p46
      %p49 = scmp.ne.s32.totalorder %s32, %s48
      %p50 = scmp.eq.s32.totalorder %s24, 0
      %p51 = por %p49, %p50
      %s53 = sadd.s32 %s52, 1
      %p56 = scmp.eq.s32.totalorder %s18, 1
      %p57 = scmp.ne.s32.totalorder %s52, %s54
      %p58 = scmp.eq.s32.totalorder %s18, 0
      %p59 = por %p57, %p58
      %p60 = scmp.ne.s32.totalorder %s52, %s54
      %p61 = scmp.eq.s32.totalorder %s23, 1
      %p62 = por %p60, %p61
      %p63 = scmp.ne.s32.totalorder %s54, %s55
      %p64 = scmp.eq.s32.totalorder %s23, 0
      %p65 = por %p63, %p64
      %p66 = scmp.ne.s32.totalorder %s54, %s55
      %p67 = scmp.eq.s32.totalorder %s24, 1
      %p68 = por %p66, %p67
      %p70 = scmp.ne.s32.totalorder %s55, %s69
      %p71 = scmp.eq.s32.totalorder %s24, 0
      %p72 = por %p70, %p71
      %s74 = sadd.s32 %s73, 1
      %p77 = scmp.eq.s32.totalorder %s18, 1
      %p78 = scmp.ne.s32.totalorder %s73, %s75
      %p79 = scmp.eq.s32.totalorder %s18, 0
      %p80 = por %p78, %p79
      %p81 = scmp.ne.s32.totalorder %s73, %s75
      %p82 = scmp.eq.s32.totalorder %s23, 1
      %p83 = por %p81, %p82
      %p84 = scmp.ne.s32.totalorder %s75, %s76
      %p85 = scmp.eq.s32.totalorder %s23, 0
      %p86 = por %p84, %p85
      %p87 = scmp.ne.s32.totalorder %s75, %s76
      %p88 = scmp.eq.s32.totalorder %s24, 1
      %p89 = por %p87, %p88
      %p91 = scmp.ne.s32.totalorder %s76, %s90
      %p92 = scmp.eq.s32.totalorder %s24, 0
      %p93 = por %p91, %p92
      %s95 = sadd.s32 %s94, 1
      %p98 = scmp.eq.s32.totalorder %s18, 1
      %p99 = scmp.ne.s32.totalorder %s94, %s96
      %p100 = scmp.eq.s32.totalorder %s18, 0
      %p101 = por %p99, %p100
      %p102 = scmp.ne.s32.totalorder %s94, %s96
      %p103 = scmp.eq.s32.totalorder %s23, 1
      %p104 = por %p102, %p103
      %p105 = scmp.ne.s32.totalorder %s96, %s97
      %p106 = scmp.eq.s32.totalorder %s23, 0
      %p107 = por %p105, %p106
      %p108 = scmp.ne.s32.totalorder %s96, %s97
      %p109 = scmp.eq.s32.totalorder %s24, 1
      %p110 = por %p108, %p109
      %p112 = scmp.ne.s32.totalorder %s97, %s111
      %p113 = scmp.eq.s32.totalorder %s24, 0
      %p114 = por %p112, %p113
      %s116 = sadd.s32 %s115, 1
      %p119 = scmp.eq.s32.totalorder %s18, 1
      %p120 = scmp.ne.s32.totalorder %s115, %s117
      %p121 = scmp.eq.s32.totalorder %s18, 0
      %p122 = por %p120, %p121
      %p123 = scmp.ne.s32.totalorder %s115, %s117
      %p124 = scmp.eq.s32.totalorder %s23, 1
      %p125 = por %p123, %p124
      %p126 = scmp.ne.s32.totalorder %s117, %s118
      %p127 = scmp.eq.s32.totalorder %s23, 0
      %p128 = por %p126, %p127
      %p129 = scmp.ne.s32.totalorder %s117, %s118
      %p130 = scmp.eq.s32.totalorder %s24, 1
      %p131 = por %p129, %p130
      %p133 = scmp.ne.s32.totalorder %s118, %s132
      %p134 = scmp.eq.s32.totalorder %s24, 0
      %p135 = por %p133, %p134
      %s137 = sadd.s32 %s136, 1
      %p140 = scmp.eq.s32.totalorder %s18, 1
      %p141 = scmp.ne.s32.totalorder %s136, %s138
      %p142 = scmp.eq.s32.totalorder %s18, 0
      %p143 = por %p141, %p142
      %p144 = scmp.ne.s32.totalorder %s136, %s138
      %p145 = scmp.eq.s32.totalorder %s23, 1
      %p146 = por %p144, %p145
      %p147 = scmp.ne.s32.totalorder %s138, %s139
      %p148 = scmp.eq.s32.totalorder %s23, 0
      %p149 = por %p147, %p148
      %p150 = scmp.ne.s32.totalorder %s138, %s139
      %p151 = scmp.eq.s32.totalorder %s24, 1
      %p152 = por %p150, %p151
      %p154 = scmp.ne.s32.totalorder %s139, %s153
      %p155 = scmp.eq.s32.totalorder %s24, 0
      %p156 = por %p154, %p155
      %s158 = sadd.s32 %s157, 1
      %p161 = scmp.eq.s32.totalorder %s18, 1
      %p162 = scmp.ne.s32.totalorder %s157, %s159
      %p163 = scmp.eq.s32.totalorder %s18, 0
      %p164 = por %p162, %p163
      %p165 = scmp.ne.s32.totalorder %s157, %s159
      %p166 = scmp.eq.s32.totalorder %s23, 1
      %p167 = por %p165, %p166
      %p168 = scmp.ne.s32.totalorder %s159, %s160
      %p169 = scmp.eq.s32.totalorder %s23, 0
      %p170 = por %p168, %p169
      %p171 = scmp.ne.s32.totalorder %s159, %s160
      %p172 = scmp.eq.s32.totalorder %s24, 1
      %p173 = por %p171, %p172
      %p175 = scmp.ne.s32.totalorder %s160, %s174
      %p176 = scmp.eq.s32.totalorder %s24, 0
      %p177 = por %p175, %p176
      %s178 = ssub.s32 %s18, %s25
      %p179 = scmp.eq.s32.totalorder %s178, 0
      %s181 = sadd.s32 %s180, 1
      %s182 = scalar_select %p179, %s180, %s181
      %p185 = pneg %p179
      %p186 = scmp.eq.s32.totalorder %s18, 1
      %p187 = por %p185, %p186
      %p188 = scmp.ne.s32.totalorder %s180, %s183
      %p189 = scmp.eq.s32.totalorder %s18, 0
      %p190 = por %p188, %p189
      %p191 = scmp.ne.s32.totalorder %s180, %s183
      %p192 = scmp.eq.s32.totalorder %s23, 1
      %p193 = por %p191, %p192
      %p194 = scmp.ne.s32.totalorder %s183, %s184
      %p195 = scmp.eq.s32.totalorder %s23, 0
      %p196 = por %p194, %p195
      %p197 = scmp.ne.s32.totalorder %s183, %s184
      %p198 = scmp.eq.s32.totalorder %s24, 1
      %p199 = por %p197, %p198
      %p201 = scmp.ne.s32.totalorder %s184, %s200
      %p202 = scmp.eq.s32.totalorder %s24, 0
      %p203 = por %p201, %p202
      %p204 = scmp.le.s32.totalorder 1, %s18
      %p205 = scmp.lt.s32.totalorder %s18, 3
      %p206 = pnand %p204, %p205
      %p207 = pneg %p206
      // Predicated region
      $region9: #{_lambda_.1} parent=5 // pred_check
        _
      $region10: #{_lambda_.1} parent=5 // pred_check_branch
        %209 = sbr.rel (%p206) target = $region12
      $region11: #{_lambda_.1} parent=5 // pred_region
        %s210 = ssub.s32 %s18, 1
        // Predicated region
        $region13: #{_lambda_.1} parent=11 // pred_check
          %p211 = pneg %p65
        $region14: #{_lambda_.1} parent=11 // pred_check_branch
          %213 = sbr.rel (%p211) target = $region16
        $region15: #{_lambda_.1} parent=11 // pred_region
          %s215 = ssub.s32 256, 256
          %216 = vsyncadd [#allocation5], %s215
          %s217 = sshll.u32 [#allocation4], 4
          %s218 = int_to_ptr.vmem [resolvable:$true] %s217
          %223 = dma.hbm_to_vmem [thread:$0]  %s1, 256, %s218, [#allocation5], 64, 64, 4
        $region16: #{_lambda_.1} parent=11 // pred_fallthru
          _
        // Predicated region
        $region17: #{_lambda_.1} parent=11 // pred_check
          %p224 = pneg %p86
        $region18: #{_lambda_.1} parent=11 // pred_check_branch
          %226 = sbr.rel (%p224) target = $region20
        $region19: #{_lambda_.1} parent=11 // pred_region
          _
        $region20: #{_lambda_.1} parent=11 // pred_fallthru
          _
        // Predicated region
        $region21: #{_lambda_.1} parent=11 // pred_check
          %p227 = pneg %p107
        $region22: #{_lambda_.1} parent=11 // pred_check_branch
          %229 = sbr.rel (%p227) target = $region24
        $region23: #{_lambda_.1} parent=11 // pred_region
          %s231 = ssub.s32 1024, 1024
          %232 = vsyncadd [#allocation5], %s231
          %s233 = sshll.u32 [#allocation6], 4
          %s234 = int_to_ptr.vmem [resolvable:$true] %s233
          %239 = dma.hbm_to_vmem [thread:$0]  %s3, 1024, %s234, [#allocation5], 64, 64, 4
        $region24: #{_lambda_.1} parent=11 // pred_fallthru
          _
        // Predicated region
        $region25: #{_lambda_.1} parent=11 // pred_check
          %p240 = pneg %p128
        $region26: #{_lambda_.1} parent=11 // pred_check_branch
          %242 = sbr.rel (%p240) target = $region28
        $region27: #{_lambda_.1} parent=11 // pred_region
          _
        $region28: #{_lambda_.1} parent=11 // pred_fallthru
          _
        // Predicated region
        $region29: #{_lambda_.1} parent=11 // pred_check
          %p243 = pneg %p149
        $region30: #{_lambda_.1} parent=11 // pred_check_branch
          %245 = sbr.rel (%p243) target = $region32
        $region31: #{_lambda_.1} parent=11 // pred_region
          %s247 = ssub.s32 1024, 1024
          %248 = vsyncadd [#allocation8], %s247
          %s249 = sshll.u32 [#allocation7], 4
          %s250 = int_to_ptr.vmem [resolvable:$true] %s249
          %255 = dma.hbm_to_vmem [thread:$0]  %s5, 1024, %s250, [#allocation8], 64, 64, 4
        $region32: #{_lambda_.1} parent=11 // pred_fallthru
          _
        // Predicated region
        $region33: #{_lambda_.1} parent=11 // pred_check
          %p256 = pneg %p170
        $region34: #{_lambda_.1} parent=11 // pred_check_branch
          %258 = sbr.rel (%p256) target = $region36
        $region35: #{_lambda_.1} parent=11 // pred_region
          _
        $region36: #{_lambda_.1} parent=11 // pred_fallthru
          _
      $region12: #{_lambda_.1} parent=5 // pred_fallthru
        _
      %p259 = scmp.lt.s32.totalorder %s18, 2
      // Predicated region
      $region37: #{_lambda_.1} parent=5 // pred_check
        %p260 = pneg %p259
      $region38: #{_lambda_.1} parent=5 // pred_check_branch
        %262 = sbr.rel (%p260) target = $region40
      $region39: #{_lambda_.1} parent=5 // pred_region
        // Predicated region
        $region41: #{_lambda_.1} parent=39 // pred_check
          %p263 = pneg %p38
        $region42: #{_lambda_.1} parent=39 // pred_check_branch
          %265 = sbr.rel (%p263) target = $region44
        $region43: #{_lambda_.1} parent=39 // pred_region
          %s266 = sand.u32 %s28, 1
          %s267 = scalar_lea.sflag [#allocation3], %s266
          %s268 = sand.u32 %s28, 1
          %s269 = smul.addr %s268, 16
          %s270 = scalar_lea.vmem [#allocation2], %s269
          %s271 = smul.u32 2, %s18
          %s273 = ssub.s32 256, 256
          %274 = vsyncadd %s267, %s273
          %s275 = smul.addr %s271, 128
          %s276 = scalar_lea.hbm %s0, %s275
          %s277 = sshll.u32 %s270, 4
          %s278 = int_to_ptr.vmem [resolvable:$true] %s277
          %283 = dma.hbm_to_vmem [thread:$0]  %s276, 256, %s278, %s267, 128, 128, 8
        $region44: #{_lambda_.1} parent=39 // pred_fallthru
          _
      $region40: #{_lambda_.1} parent=5 // pred_fallthru
        _
      %p284 = scmp.le.s32.totalorder 1, %s18
      %p285 = scmp.lt.s32.totalorder %s18, 3
      %p286 = pnand %p284, %p285
      %p287 = pneg %p286
      // Predicated region
      $region45: #{_lambda_.1} parent=5 // pred_check
        _
      $region46: #{_lambda_.1} parent=5 // pred_check_branch
        %289 = sbr.rel (%p286) target = $region48
      $region47: #{_lambda_.1} parent=5 // pred_region
        %s290 = ssub.s32 %s18, 1
        %s291 = sand.u32 %s31, 1
        %s292 = scalar_lea.sflag [#allocation3], %s291
        %s293 = sand.u32 %s31, 1
        %s294 = smul.addr %s293, 16
        %s295 = scalar_lea.vmem [#allocation2], %s294
        // Predicated region
        $region49: #{_lambda_.1} parent=47 // pred_check
          %p296 = pneg %p44
        $region50: #{_lambda_.1} parent=47 // pred_check_branch
          %298 = sbr.rel (%p296) target = $region52
        $region51: #{_lambda_.1} parent=47 // pred_region
          %299 = dma.done %s292, 256
        $region52: #{_lambda_.1} parent=47 // pred_fallthru
          _
        // Predicated region
        $region53: #{_lambda_.1} parent=47 // pred_check
          %p300 = pneg %p65
        $region54: #{_lambda_.1} parent=47 // pred_check_branch
          %302 = sbr.rel (%p300) target = $region56
        $region55: #{_lambda_.1} parent=47 // pred_region
          %303 = dma.done [#allocation5], 256
        $region56: #{_lambda_.1} parent=47 // pred_fallthru
          _
        // Predicated region
        $region57: #{_lambda_.1} parent=47 // pred_check
          %p304 = pneg %p107
        $region58: #{_lambda_.1} parent=47 // pred_check_branch
          %306 = sbr.rel (%p304) target = $region60
        $region59: #{_lambda_.1} parent=47 // pred_region
          %307 = dma.done [#allocation5], 1024
        $region60: #{_lambda_.1} parent=47 // pred_fallthru
          _
        // Predicated region
        $region61: #{_lambda_.1} parent=47 // pred_check
          %p308 = pneg %p149
        $region62: #{_lambda_.1} parent=47 // pred_check_branch
          %310 = sbr.rel (%p308) target = $region64
        $region63: #{_lambda_.1} parent=47 // pred_region
          %311 = dma.done [#allocation8], 1024
        $region64: #{_lambda_.1} parent=47 // pred_fallthru
          _
        %s312 = sand.u32 %s31, 1
        %s313 = scalar_lea.sflag [#allocation3], %s312
        %s314 = sand.u32 %s31, 1
        %s315 = smul.addr %s314, 16
        %s316 = scalar_lea.vmem [#allocation2], %s315
        %p317 = pneg %p44
        %p318 = pneg %p41
        %p319 = pneg %p65
        %p320 = pneg %p62
        %p321 = pneg %p86
        %p322 = pneg %p83
        %p323 = pneg %p107
        %p324 = pneg %p104
        %p325 = pneg %p128
        %p326 = pneg %p125
        %p327 = pneg %p149
        %p328 = pneg %p146
        %p329 = pneg %p170
        %p330 = pneg %p167
        %p331 = pneg %p196
        %p332 = pneg %p193
        %s333 = smul.u32 2, %s23
        %p334 = scmp.lt.s32.totalorder %s333, 3
        %s335 = scalar_select %p334, %s333, 3
        %s336 = smul.addr %s335, 8
        %s337 = scalar_lea.vmem %s7, %s336
        %s338 = smul.u32 2, %s23
        %s339 = smul.u32 2, %s23
        %p340 = scmp.lt.s32.totalorder %s339, 3
        %s341 = scalar_select %p340, %s339, 3
        %s342 = smul.addr %s341, 8
        %s343 = scalar_lea.vmem %s7, %s342
        %s344 = smul.u32 2, %s23
        %v346 = vld [vmem:[%s295] sm:$0xff]
        %v347 = vld [vmem:[%s295 + $0x8] sm:$0xff]
        %v348 = vld [vmem:[#allocation4] sm:$0xf]
        %v349 = vld [vmem:[#allocation4 + $0x4] sm:$0xf]
        %v350 = vld [vmem:[#allocation4 + $0x8] sm:$0xf]
        %v351 = vld [vmem:[#allocation4 + $0xc] sm:$0xf]
        %v352 = vld [vmem:[%s2] sm:$0x1]
        %v353 = vpack.c.bf16 %v347, %v346
        %v355 = vlaneseq
        %v356 = vshrl.u32 %v355, 7
        %v357 = vsub.s32 0, %v356
        %v358 = vrot.slane %v352, %v357
        %v364 = vunpack.c.l.b16 %v348
        %v365 = vunpack.c.l.b16 %v349
        %v366 = vunpack.c.l.b16 %v350
        %v367 = vunpack.c.l.b16 %v351
        %v368 = vpack.c.b16 %v365, %v364
        %v369 = vpack.c.b16 %v367, %v366
        %vm372 = vcmask 261120
        %v374 = vsel %vm372, %v353, 0
        %376 = vmatprep.subr.bf16.mxu0 0
        %377 = vmatpush1.bf16.msra.mxu0 0
        %378 = vmatprep.subr.bf16.mxu0 0
        %379 = vmatpush1.bf16.msra.mxu0 0
        %380 = vmatprep.subr.bf16.mxu0 0
        %381 = vmatpush1.bf16.msra.mxu0 0
        %382 = vmatprep.subr.bf16.mxu0 0
        %383 = vmatpush1.bf16.msra.mxu0 0
        %384 = vmatprep.subr.bf16.mxu0 0
        %385 = vmatpush1.bf16.msra.mxu0 0
        %386 = vmatprep.subr.bf16.mxu0 0
        %387 = vmatpush1.bf16.msra.mxu0 0
        %388 = vmatprep.subr.bf16.mxu0 0
        %389 = vmatpush1.bf16.msra.mxu0 %v369
        %390 = vmatprep.subr.bf16.mxu0 0
        %391 = vmatpush1.bf16.msra.mxu0 %v368
        %392 = vmatprep.subr.bf16.mxu0 0
        %393 = vmatpush2.bf16.msra.mxu0 0
        %394 = vmatprep.subr.bf16.mxu0 0
        %395 = vmatpush2.bf16.msra.mxu0 0
        %396 = vmatprep.subr.bf16.mxu0 0
        %397 = vmatpush2.bf16.msra.mxu0 0
        %398 = vmatprep.subr.bf16.mxu0 0
        %399 = vmatpush2.bf16.msra.mxu0 0
        %400 = vmatprep.subr.bf16.mxu0 0
        %401 = vmatpush2.bf16.msra.mxu0 0
        %402 = vmatprep.subr.bf16.mxu0 0
        %403 = vmatpush2.bf16.msra.mxu0 0
        %404 = vmatprep.subr.bf16.mxu0 0
        %405 = vmatpush2.bf16.msra.mxu0 0
        %406 = vmatprep.subr.bf16.mxu0 0
        %407 = vmatpush2.bf16.msra.mxu0 0
        %408 = vmatprep.mubr.bf16.mxu0 0
        %409 = vmatmul.mubr.bf16.gmra.mxu0 %v374
        %v410 = vpop.f32.mrf.mxu0
        %v411 = vadd.f32 %v358, %v410
        %v412 = vpop.f32.mrf.mxu0
        %v413 = vpop.f32.mrf.mxu0
        %v414 = vadd.f32 %v358, %v413
        %v415 = vpop.f32.mrf.mxu0
        %416 = vdwg.mxu0
        %v417 = vmax.f32 %v411, 0.0
        %v418 = vmax.f32 %v414, 0.0
        %v419 = vld [vmem:[#allocation6] sm:$0xf]
        %v420 = vld [vmem:[#allocation6 + $0x4] sm:$0xf]
        %v421 = vld [vmem:[#allocation6 + $0x8] sm:$0xf]
        %v422 = vld [vmem:[#allocation6 + $0xc] sm:$0xf]
        %v423 = vld [vmem:[#allocation6 + $0x10] sm:$0xf]
        %v424 = vld [vmem:[#allocation6 + $0x14] sm:$0xf]
        %v425 = vld [vmem:[#allocation6 + $0x18] sm:$0xf]
        %v426 = vld [vmem:[#allocation6 + $0x1c] sm:$0xf]
        %v427 = vld [vmem:[#allocation6 + $0x20] sm:$0xf]
        %v428 = vld [vmem:[#allocation6 + $0x24] sm:$0xf]
        %v429 = vld [vmem:[#allocation6 + $0x28] sm:$0xf]
        %v430 = vld [vmem:[#allocation6 + $0x2c] sm:$0xf]
        %v431 = vld [vmem:[#allocation6 + $0x30] sm:$0xf]
        %v432 = vld [vmem:[#allocation6 + $0x34] sm:$0xf]
        %v433 = vld [vmem:[#allocation6 + $0x38] sm:$0xf]
        %v434 = vld [vmem:[#allocation6 + $0x3c] sm:$0xf]
        %v435 = vld [vmem:[%s4] sm:$0x1]
        %v436 = vpack.c.bf16 %v418, %v417
        %v438 = vlaneseq
        %v439 = vshrl.u32 %v438, 7
        %v440 = vsub.s32 0, %v439
        %v441 = vrot.slane %v435, %v440
        %v459 = vunpack.c.l.b16 %v419
        %v460 = vunpack.c.l.b16 %v420
        %v461 = vunpack.c.l.b16 %v421
        %v462 = vunpack.c.l.b16 %v422
        %v463 = vunpack.c.l.b16 %v423
        %v464 = vunpack.c.l.b16 %v424
        %v465 = vunpack.c.l.b16 %v425
        %v466 = vunpack.c.l.b16 %v426
        %v467 = vunpack.c.l.b16 %v427
        %v468 = vunpack.c.l.b16 %v428
        %v469 = vunpack.c.l.b16 %v429
        %v470 = vunpack.c.l.b16 %v430
        %v471 = vunpack.c.l.b16 %v431
        %v472 = vunpack.c.l.b16 %v432
        %v473 = vunpack.c.l.b16 %v433
        %v474 = vunpack.c.l.b16 %v434
        %v475 = vpack.c.b16 %v460, %v459
        %v476 = vpack.c.b16 %v462, %v461
        %v477 = vpack.c.b16 %v464, %v463
        %v478 = vpack.c.b16 %v466, %v465
        %v479 = vpack.c.b16 %v468, %v467
        %v480 = vpack.c.b16 %v470, %v469
        %v481 = vpack.c.b16 %v472, %v471
        %v482 = vpack.c.b16 %v474, %v473
        %491 = vmatprep.subr.bf16.mxu0 0
        %492 = vmatpush1.bf16.msra.mxu0 %v482
        %493 = vmatprep.subr.bf16.mxu0 0
        %494 = vmatpush1.bf16.msra.mxu0 %v481
        %495 = vmatprep.subr.bf16.mxu0 0
        %496 = vmatpush1.bf16.msra.mxu0 %v480
        %497 = vmatprep.subr.bf16.mxu0 0
        %498 = vmatpush1.bf16.msra.mxu0 %v479
        %499 = vmatprep.subr.bf16.mxu0 0
        %500 = vmatpush1.bf16.msra.mxu0 %v478
        %501 = vmatprep.subr.bf16.mxu0 0
        %502 = vmatpush1.bf16.msra.mxu0 %v477
        %503 = vmatprep.subr.bf16.mxu0 0
        %504 = vmatpush1.bf16.msra.mxu0 %v476
        %505 = vmatprep.subr.bf16.mxu0 0
        %506 = vmatpush1.bf16.msra.mxu0 %v475
        %507 = vmatprep.subr.bf16.mxu0 0
        %508 = vmatpush2.bf16.msra.mxu0 0
        %509 = vmatprep.subr.bf16.mxu0 0
        %510 = vmatpush2.bf16.msra.mxu0 0
        %511 = vmatprep.subr.bf16.mxu0 0
        %512 = vmatpush2.bf16.msra.mxu0 0
        %513 = vmatprep.subr.bf16.mxu0 0
        %514 = vmatpush2.bf16.msra.mxu0 0
        %515 = vmatprep.subr.bf16.mxu0 0
        %516 = vmatpush2.bf16.msra.mxu0 0
        %517 = vmatprep.subr.bf16.mxu0 0
        %518 = vmatpush2.bf16.msra.mxu0 0
        %519 = vmatprep.subr.bf16.mxu0 0
        %520 = vmatpush2.bf16.msra.mxu0 0
        %521 = vmatprep.subr.bf16.mxu0 0
        %522 = vmatpush2.bf16.msra.mxu0 0
        %523 = vmatprep.mubr.bf16.mxu0 0
        %524 = vmatmul.mubr.bf16.gmra.mxu0 %v436
        %v525 = vpop.f32.mrf.mxu0
        %v526 = vadd.f32 %v441, %v525
        %v527 = vpop.f32.mrf.mxu0
        %v528 = vpop.f32.mrf.mxu0
        %v529 = vadd.f32 %v441, %v528
        %v530 = vpop.f32.mrf.mxu0
        %531 = vdwg.mxu0
        %v532 = vmax.f32 %v526, 0.0
        %v533 = vmax.f32 %v529, 0.0
        %v534 = vld [vmem:[#allocation7] sm:$0xf]
        %v535 = vld [vmem:[#allocation7 + $0x4] sm:$0xf]
        %v536 = vld [vmem:[#allocation7 + $0x8] sm:$0xf]
        %v537 = vld [vmem:[#allocation7 + $0xc] sm:$0xf]
        %v538 = vld [vmem:[#allocation7 + $0x10] sm:$0xf]
        %v539 = vld [vmem:[#allocation7 + $0x14] sm:$0xf]
        %v540 = vld [vmem:[#allocation7 + $0x18] sm:$0xf]
        %v541 = vld [vmem:[#allocation7 + $0x1c] sm:$0xf]
        %v542 = vld [vmem:[#allocation7 + $0x20] sm:$0xf]
        %v543 = vld [vmem:[#allocation7 + $0x24] sm:$0xf]
        %v544 = vld [vmem:[#allocation7 + $0x28] sm:$0xf]
        %v545 = vld [vmem:[#allocation7 + $0x2c] sm:$0xf]
        %v546 = vld [vmem:[#allocation7 + $0x30] sm:$0xf]
        %v547 = vld [vmem:[#allocation7 + $0x34] sm:$0xf]
        %v548 = vld [vmem:[#allocation7 + $0x38] sm:$0xf]
        %v549 = vld [vmem:[#allocation7 + $0x3c] sm:$0xf]
        %v550 = vld [vmem:[%s6] sm:$0x1]
        %v551 = vpack.c.bf16 %v533, %v532
        %v553 = vlaneseq
        %v554 = vshrl.u32 %v553, 7
        %v555 = vsub.s32 0, %v554
        %v556 = vrot.slane %v550, %v555
        %v574 = vunpack.c.l.b16 %v534
        %v575 = vunpack.c.l.b16 %v535
        %v576 = vunpack.c.l.b16 %v536
        %v577 = vunpack.c.l.b16 %v537
        %v578 = vunpack.c.l.b16 %v538
        %v579 = vunpack.c.l.b16 %v539
        %v580 = vunpack.c.l.b16 %v540
        %v581 = vunpack.c.l.b16 %v541
        %v582 = vunpack.c.l.b16 %v542
        %v583 = vunpack.c.l.b16 %v543
        %v584 = vunpack.c.l.b16 %v544
        %v585 = vunpack.c.l.b16 %v545
        %v586 = vunpack.c.l.b16 %v546
        %v587 = vunpack.c.l.b16 %v547
        %v588 = vunpack.c.l.b16 %v548
        %v589 = vunpack.c.l.b16 %v549
        %v590 = vpack.c.b16 %v575, %v574
        %v591 = vpack.c.b16 %v577, %v576
        %v592 = vpack.c.b16 %v579, %v578
        %v593 = vpack.c.b16 %v581, %v580
        %v594 = vpack.c.b16 %v583, %v582
        %v595 = vpack.c.b16 %v585, %v584
        %v596 = vpack.c.b16 %v587, %v586
        %v597 = vpack.c.b16 %v589, %v588
        %606 = vmatprep.subr.bf16.mxu0 0
        %607 = vmatpush1.bf16.msra.mxu0 %v597
        %608 = vmatprep.subr.bf16.mxu0 0
        %609 = vmatpush1.bf16.msra.mxu0 %v596
        %610 = vmatprep.subr.bf16.mxu0 0
        %611 = vmatpush1.bf16.msra.mxu0 %v595
        %612 = vmatprep.subr.bf16.mxu0 0
        %613 = vmatpush1.bf16.msra.mxu0 %v594
        %614 = vmatprep.subr.bf16.mxu0 0
        %615 = vmatpush1.bf16.msra.mxu0 %v593
        %616 = vmatprep.subr.bf16.mxu0 0
        %617 = vmatpush1.bf16.msra.mxu0 %v592
        %618 = vmatprep.subr.bf16.mxu0 0
        %619 = vmatpush1.bf16.msra.mxu0 %v591
        %620 = vmatprep.subr.bf16.mxu0 0
        %621 = vmatpush1.bf16.msra.mxu0 %v590
        %622 = vmatprep.subr.bf16.mxu0 0
        %623 = vmatpush2.bf16.msra.mxu0 0
        %624 = vmatprep.subr.bf16.mxu0 0
        %625 = vmatpush2.bf16.msra.mxu0 0
        %626 = vmatprep.subr.bf16.mxu0 0
        %627 = vmatpush2.bf16.msra.mxu0 0
        %628 = vmatprep.subr.bf16.mxu0 0
        %629 = vmatpush2.bf16.msra.mxu0 0
        %630 = vmatprep.subr.bf16.mxu0 0
        %631 = vmatpush2.bf16.msra.mxu0 0
        %632 = vmatprep.subr.bf16.mxu0 0
        %633 = vmatpush2.bf16.msra.mxu0 0
        %634 = vmatprep.subr.bf16.mxu0 0
        %635 = vmatpush2.bf16.msra.mxu0 0
        %636 = vmatprep.subr.bf16.mxu0 0
        %637 = vmatpush2.bf16.msra.mxu0 0
        %638 = vmatprep.mubr.bf16.mxu0 0
        %639 = vmatmul.mubr.bf16.gmra.mxu0 %v551
        %v640 = vpop.f32.mrf.mxu0
        %v641 = vadd.f32 %v556, %v640
        %v642 = vpop.f32.mrf.mxu0
        %v643 = vpop.f32.mrf.mxu0
        %v644 = vadd.f32 %v556, %v643
        %v645 = vpop.f32.mrf.mxu0
        %646 = vdwg.mxu0
        %647 = vst [vmem:[%s343] sm:$0xff] %v641
        %648 = vst [vmem:[%s343 + $0x8] sm:$0xff] %v644
        %s649 = smul.u32 2, %s23
        %p650 = scmp.lt.s32.totalorder %s649, 3
        %s651 = scalar_select %p650, %s649, 3
        %s652 = smul.addr %s651, 8
        %s653 = scalar_lea.vmem %s7, %s652
        // Predicated region
        $region65: #{_lambda_.1} parent=47 // pred_check
          %p654 = pneg %p193
        $region66: #{_lambda_.1} parent=47 // pred_check_branch
          %656 = sbr.rel (%p654) target = $region68
        $region67: #{_lambda_.1} parent=47 // pred_region
          %s657 = smul.u32 2, %s23
        $region68: #{_lambda_.1} parent=47 // pred_fallthru
          _
      $region48: #{_lambda_.1} parent=5 // pred_fallthru
        _
      %p658 = scmp.le.s32.totalorder 2, %s18
      // Predicated region
      $region69: #{_lambda_.1} parent=5 // pred_check
        %p659 = pneg %p658
      $region70: #{_lambda_.1} parent=5 // pred_check_branch
        %661 = sbr.rel (%p659) target = $region72
      $region71: #{_lambda_.1} parent=5 // pred_region
        %s662 = ssub.s32 %s18, 2
        // Predicated region
        $region73: #{_lambda_.1} parent=71 // pred_check
          %p663 = pneg %p199
        $region74: #{_lambda_.1} parent=71 // pred_check_branch
          %665 = sbr.rel (%p663) target = $region76
        $region75: #{_lambda_.1} parent=71 // pred_region
          %s666 = smul.u32 2, %s24
          %p667 = scmp.lt.s32.totalorder %s666, 3
          %s668 = scalar_select %p667, %s666, 3
          %s669 = smul.addr %s668, 8
          %s670 = scalar_lea.vmem %s7, %s669
        $region76: #{_lambda_.1} parent=71 // pred_fallthru
          _
      $region72: #{_lambda_.1} parent=5 // pred_fallthru
        _
    $region6: #{_lambda_.1} parent=1 // loop_footer
      %s22 = sadd.s32 1, %s18
    $region7: #{_lambda_.1} parent=1 // loop_footer_branch
      %17 = sbr.rel target = $region3
    $region8: #{_lambda_.1} parent=1 // loop_exit
      _
    %671 = vsyncpa [#allocation3], 1
    %s672 = scalar_lea.sflag [#allocation3], 1
    %673 = vsyncpa %s672, 1
    %674 = vsyncpa [#allocation5], 1
    %675 = vsyncpa [#allocation8], 1

</llo_original>
